<compile_context>
chip_gen: v5e
topology: v5e:2x2
jax: 0.10.0
libtpu: 0.0.40
codegen_flags: <defaults>
</compile_context>

<pallas_src>
import jax
import jax.numpy as jnp
from jax.experimental import pallas as pl
from jax.experimental.pallas import tpu as pltpu

INPUT_DIM = 29
H1 = 128
H2 = 64
OUTPUT_DIM = 8
BN_EPS = 1e-5


def _round_up(x, m):
    return (x + m - 1) // m * m


def _mlp_kernel(x_ref,
                w1_ref, b1_ref,
                w2_ref, b2_ref,
                w3_ref, b3_ref,
                o_ref):
    # x: (tile, 29) f32 block read straight from HBM; cast to bf16 for the MXU.
    x = x_ref[...].astype(jnp.bfloat16)

    # fc1 (+ folded BN1) + ReLU       (dropout: identity in eval mode)
    h1 = jnp.dot(x, w1_ref[...], preferred_element_type=jnp.float32)
    h1 = jnp.maximum(h1 + b1_ref[...], 0.0).astype(jnp.bfloat16)

    # fc2 (+ folded BN2) + ReLU       (dropout: identity in eval mode)
    h2 = jnp.dot(h1, w2_ref[...], preferred_element_type=jnp.float32)
    h2 = jnp.maximum(h2 + b2_ref[...], 0.0).astype(jnp.bfloat16)

    # fc3 -> (tile, 8) logits, stored narrow (masked stores, tiny byte count)
    out = jnp.dot(h2, w3_ref[...], preferred_element_type=jnp.float32)
    o_ref[...] = (out + b3_ref[...]).astype(o_ref.dtype)


def prepare_params(raw_params):
    """Fold BN into the linears and cast once (call at model-load time)."""
    (w1, b1, s1, t1, w2, b2, s2, t2, w3, b3) = raw_params
    w1f = (w1 * s1).astype(jnp.bfloat16)          # (29, 128)
    b1f = (b1 * s1 + t1).astype(jnp.float32)      # (1, 128)
    w2f = (w2 * s2).astype(jnp.bfloat16)          # (128, 64)
    b2f = (b2 * s2 + t2).astype(jnp.float32)      # (1, 64)
    w3f = w3.astype(jnp.bfloat16)                 # (64, 8)
    b3f = b3.astype(jnp.float32)                  # (1, 8)
    return (w1f, b1f, w2f, b2f, w3f, b3f)


def predictor_forward(x, prepared_params, *, batch_tile=2048):
    """x: [B, INPUT_DIM] float32. Returns [B, OUTPUT_DIM] float32."""
    B = x.shape[0]
    w1, b1, w2, b2, w3, b3 = prepared_params

    # Tile: multiple of 8 sublanes (f32 blocks), never larger than the
    # (rounded-up) batch. Ragged batches pad batch rows only (29 f32/row).
    tile = min(batch_tile, _round_up(B, 8))
    tile = _round_up(tile, 8)
    Bp = _round_up(B, tile)
    xp = x if Bp == B else jnp.pad(x, ((0, Bp - B), (0, 0)))

    def full_spec(shape):
        # whole-array block, same block every grid step (grid-invariant)
        return pl.BlockSpec(shape, lambda i: (0,) * len(shape))

    grid = (Bp // tile,)

    weight_elems = INPUT_DIM * H1 + H1 * H2 + H2 * OUTPUT_DIM
    cost = pl.CostEstimate(
        flops=2 * Bp * weight_elems,
        transcendentals=0,
        bytes_accessed=(Bp * INPUT_DIM * 4            # x (f32)
                        + weight_elems * 2            # bf16 weights
                        + (H1 + H2 + OUTPUT_DIM) * 4  # f32 biases
                        + Bp * OUTPUT_DIM * 4),       # output (f32)
    )

    out = pl.pallas_call(
        _mlp_kernel,
        out_shape=jax.ShapeDtypeStruct((Bp, OUTPUT_DIM), jnp.float32),
        grid_spec=pltpu.PrefetchScalarGridSpec(
            num_scalar_prefetch=0,
            grid=grid,
            in_specs=[
                pl.BlockSpec((tile, INPUT_DIM), lambda i: (i, 0)),  # x tile
                full_spec(w1.shape), full_spec(b1.shape),
                full_spec(w2.shape), full_spec(b2.shape),
                full_spec(w3.shape), full_spec(b3.shape),
            ],
            out_specs=pl.BlockSpec((tile, OUTPUT_DIM), lambda i: (i, 0)),
        ),
        compiler_params=pltpu.CompilerParams(
            dimension_semantics=("parallel",)),
        cost_estimate=cost,
    )(xp, w1, b1, w2, b2, w3, b3)

    return out[:B] if Bp != B else out


def init_raw_params(key):
    """Deterministic parameter init (shapes from Predictor.__init__)."""
    ks = jax.random.split(key, 14)

    def linear(kw, kb, fan_in, fan_out):
        # PyTorch default: U(-1/sqrt(fan_in), 1/sqrt(fan_in))
        bound = 1.0 / jnp.sqrt(fan_in)
        w = jax.random.uniform(kw, (fan_in, fan_out), jnp.float32, -bound, bound)
        b = jax.random.uniform(kb, (1, fan_out), jnp.float32, -bound, bound)
        return w, b

    w1, b1 = linear(ks[0], ks[1], INPUT_DIM, H1)
    w2, b2 = linear(ks[2], ks[3], H1, H2)
    w3, b3 = linear(ks[4], ks[5], H2, OUTPUT_DIM)

    def bn_fold(kg, kb, km, kv, dim):
        gamma = 1.0 + 0.1 * jax.random.normal(kg, (1, dim), jnp.float32)
        beta = 0.1 * jax.random.normal(kb, (1, dim), jnp.float32)
        mean = 0.1 * jax.random.normal(km, (1, dim), jnp.float32)
        var = jnp.abs(1.0 + 0.1 * jax.random.normal(kv, (1, dim), jnp.float32))
        scale = gamma / jnp.sqrt(var + BN_EPS)
        shift = beta - mean * scale
        return scale, shift

    s1, t1 = bn_fold(ks[6], ks[7], ks[8], ks[9], H1)
    s2, t2 = bn_fold(ks[10], ks[11], ks[12], ks[13], H2)

    return (w1, b1, s1, t1, w2, b2, s2, t2, w3, b3)


def reference_forward(x, raw_params):
    """Pure-JAX f32 reference for correctness checking."""
    (w1, b1, s1, t1, w2, b2, s2, t2, w3, b3) = raw_params
    h1 = jnp.maximum((x @ w1 + b1) * s1 + t1, 0.0)
    h2 = jnp.maximum((h1 @ w2 + b2) * s2 + t2, 0.0)
    return h2 @ w3 + b3


if __name__ == "__main__":
    key = jax.random.PRNGKey(0)
    k_param, k_x = jax.random.split(key)

    raw_params = init_raw_params(k_param)
    params = prepare_params(raw_params)   # BN fold / cast done once, not per call

    B = 48  # small batch; with batch_tile=16 this exercises a 3-step grid
    x = jax.random.normal(k_x, (B, INPUT_DIM), jnp.float32)

    out = predictor_forward(x, params, batch_tile=16)
    out = jax.block_until_ready(out)

    ref = reference_forward(x, raw_params)
    assert out.shape == (B, OUTPUT_DIM)
    # bf16 matmuls with f32 accumulation -> loose-ish tolerance vs f32 ref.
    assert jnp.allclose(out, ref, atol=5e-2, rtol=5e-2), "mismatch vs reference"

    print("KERNEL_OK")
</pallas_src>

<mosaic_0001>
module attributes {stable_mosaic.version = 11 : i64} {
  func.func @_mlp_kernel(%arg0: i32, %arg1: memref<16x29xf32, #tpu.memory_space<vmem>>, %arg2: memref<29x128xbf16, #tpu.memory_space<vmem>>, %arg3: memref<1x128xf32, #tpu.memory_space<vmem>>, %arg4: memref<128x64xbf16, #tpu.memory_space<vmem>>, %arg5: memref<1x64xf32, #tpu.memory_space<vmem>>, %arg6: memref<64x8xbf16, #tpu.memory_space<vmem>>, %arg7: memref<1x8xf32, #tpu.memory_space<vmem>>, %arg8: memref<16x8xf32, #tpu.memory_space<vmem>>) attributes {dimension_semantics = [#tpu.dimension_semantics<parallel>], iteration_bounds = array<i64: 3>, scalar_prefetch = 0 : i64, scratch_operands = 0 : i64, tpu.core_type = #tpu.core_type<tc>, window_params = [{transform_indices = @transform_0, window_bounds = array<i64: 16, 29>}, {pipeline_mode = #tpu.pipeline_mode<synchronous>, transform_indices = @transform_1, window_bounds = array<i64: 29, 128>}, {pipeline_mode = #tpu.pipeline_mode<synchronous>, transform_indices = @transform_2, window_bounds = array<i64: 1, 128>}, {pipeline_mode = #tpu.pipeline_mode<synchronous>, transform_indices = @transform_3, window_bounds = array<i64: 128, 64>}, {pipeline_mode = #tpu.pipeline_mode<synchronous>, transform_indices = @transform_4, window_bounds = array<i64: 1, 64>}, {pipeline_mode = #tpu.pipeline_mode<synchronous>, transform_indices = @transform_5, window_bounds = array<i64: 64, 8>}, {pipeline_mode = #tpu.pipeline_mode<synchronous>, transform_indices = @transform_6, window_bounds = array<i64: 1, 8>}, {transform_indices = @transform_7, window_bounds = array<i64: 16, 8>}]} {
    %c0 = arith.constant 0 : index
    %c0_0 = arith.constant 0 : index
    %0 = vector.load %arg1[%c0, %c0_0] : memref<16x29xf32, #tpu.memory_space<vmem>>, vector<16x29xf32>
    %1 = arith.truncf %0 : vector<16x29xf32> to vector<16x29xbf16>
    %c0_1 = arith.constant 0 : index
    %c0_2 = arith.constant 0 : index
    %2 = vector.load %arg2[%c0_1, %c0_2] : memref<29x128xbf16, #tpu.memory_space<vmem>>, vector<29x128xbf16>
    %cst = arith.constant dense<0.000000e+00> : vector<16x128xf32>
    %3 = tpu.matmul %1, %2, %cst {dimension_numbers = #tpu.dot_dimension_numbers<[1], [0], [0], [1], [0, 0, 1, 1], [], []>} : vector<16x29xbf16>, vector<29x128xbf16>, vector<16x128xf32> -> vector<16x128xf32>
    %c0_3 = arith.constant 0 : index
    %c0_4 = arith.constant 0 : index
    %4 = vector.load %arg3[%c0_3, %c0_4] : memref<1x128xf32, #tpu.memory_space<vmem>>, vector<1x128xf32>
    %5 = vector.broadcast %4 : vector<1x128xf32> to vector<16x128xf32>
    %6 = arith.addf %3, %5 : vector<16x128xf32>
    %cst_5 = arith.constant 0.000000e+00 : f32
    %7 = vector.broadcast %cst_5 : f32 to vector<16x128xf32>
    %8 = arith.maximumf %6, %7 : vector<16x128xf32>
    %9 = arith.truncf %8 : vector<16x128xf32> to vector<16x128xbf16>
    %c0_6 = arith.constant 0 : index
    %c0_7 = arith.constant 0 : index
    %10 = vector.load %arg4[%c0_6, %c0_7] : memref<128x64xbf16, #tpu.memory_space<vmem>>, vector<128x64xbf16>
    %cst_8 = arith.constant dense<0.000000e+00> : vector<16x64xf32>
    %11 = tpu.matmul %9, %10, %cst_8 {dimension_numbers = #tpu.dot_dimension_numbers<[1], [0], [0], [1], [0, 0, 1, 1], [], []>} : vector<16x128xbf16>, vector<128x64xbf16>, vector<16x64xf32> -> vector<16x64xf32>
    %c0_9 = arith.constant 0 : index
    %c0_10 = arith.constant 0 : index
    %12 = vector.load %arg5[%c0_9, %c0_10] : memref<1x64xf32, #tpu.memory_space<vmem>>, vector<1x64xf32>
    %13 = vector.broadcast %12 : vector<1x64xf32> to vector<16x64xf32>
    %14 = arith.addf %11, %13 : vector<16x64xf32>
    %cst_11 = arith.constant 0.000000e+00 : f32
    %15 = vector.broadcast %cst_11 : f32 to vector<16x64xf32>
    %16 = arith.maximumf %14, %15 : vector<16x64xf32>
    %17 = arith.truncf %16 : vector<16x64xf32> to vector<16x64xbf16>
    %c0_12 = arith.constant 0 : index
    %c0_13 = arith.constant 0 : index
    %18 = vector.load %arg6[%c0_12, %c0_13] : memref<64x8xbf16, #tpu.memory_space<vmem>>, vector<64x8xbf16>
    %cst_14 = arith.constant dense<0.000000e+00> : vector<16x8xf32>
    %19 = tpu.matmul %17, %18, %cst_14 {dimension_numbers = #tpu.dot_dimension_numbers<[1], [0], [0], [1], [0, 0, 1, 1], [], []>} : vector<16x64xbf16>, vector<64x8xbf16>, vector<16x8xf32> -> vector<16x8xf32>
    %c0_15 = arith.constant 0 : index
    %c0_16 = arith.constant 0 : index
    %20 = vector.load %arg7[%c0_15, %c0_16] : memref<1x8xf32, #tpu.memory_space<vmem>>, vector<1x8xf32>
    %21 = vector.broadcast %20 : vector<1x8xf32> to vector<16x8xf32>
    %22 = arith.addf %19, %21 : vector<16x8xf32>
    %c0_17 = arith.constant 0 : index
    %c0_18 = arith.constant 0 : index
    %23 = vector.load %arg8[%c0_17, %c0_18] : memref<16x8xf32, #tpu.memory_space<vmem>>, vector<16x8xf32>
    tpu.vector_store %arg8[%c0_17, %c0_18], %22 {strides = array<i32>} : memref<16x8xf32, #tpu.memory_space<vmem>>, vector<16x8xf32>,
    return
  }
  func.func @transform_0(%arg0: i32) -> (i32, i32) {
    %c0_i32 = arith.constant 0 : i32
    %c0_i32_0 = arith.constant 0 : i32
    return %arg0, %c0_i32 : i32, i32
  }
  func.func @transform_1(%arg0: i32) -> (i32, i32) {
    %c0_i32 = arith.constant 0 : i32
    %c0_i32_0 = arith.constant 0 : i32
    %c0_i32_1 = arith.constant 0 : i32
    return %c0_i32, %c0_i32_0 : i32, i32
  }
  func.func @transform_2(%arg0: i32) -> (i32, i32) {
    %c0_i32 = arith.constant 0 : i32
    %c0_i32_0 = arith.constant 0 : i32
    %c0_i32_1 = arith.constant 0 : i32
    return %c0_i32, %c0_i32_0 : i32, i32
  }
  func.func @transform_3(%arg0: i32) -> (i32, i32) {
    %c0_i32 = arith.constant 0 : i32
    %c0_i32_0 = arith.constant 0 : i32
    %c0_i32_1 = arith.constant 0 : i32
    return %c0_i32, %c0_i32_0 : i32, i32
  }
  func.func @transform_4(%arg0: i32) -> (i32, i32) {
    %c0_i32 = arith.constant 0 : i32
    %c0_i32_0 = arith.constant 0 : i32
    %c0_i32_1 = arith.constant 0 : i32
    return %c0_i32, %c0_i32_0 : i32, i32
  }
  func.func @transform_5(%arg0: i32) -> (i32, i32) {
    %c0_i32 = arith.constant 0 : i32
    %c0_i32_0 = arith.constant 0 : i32
    %c0_i32_1 = arith.constant 0 : i32
    return %c0_i32, %c0_i32_0 : i32, i32
  }
  func.func @transform_6(%arg0: i32) -> (i32, i32) {
    %c0_i32 = arith.constant 0 : i32
    %c0_i32_0 = arith.constant 0 : i32
    %c0_i32_1 = arith.constant 0 : i32
    return %c0_i32, %c0_i32_0 : i32, i32
  }
  func.func @transform_7(%arg0: i32) -> (i32, i32) {
    %c0_i32 = arith.constant 0 : i32
    %c0_i32_0 = arith.constant 0 : i32
    return %arg0, %c0_i32 : i32, i32
  }
}

</mosaic_0001>

<llo_original>
// kernel: tpu_custom_call.1
$region0: #{tpu_custom_call.1}
  #allocation0 [shape = 'u32[]', space=smem, size = 0x4, offset = 0x4, fixed_abs, tag = 'smem constant byte address 0x4 - core index']
  #allocation1 [shape = 'u32[72,128]{1,0:T(1,128)}', space=vmem, size = 0x9000, scoped, tag = 'internal scratch']
  %s0 = inlined_call_operand.vmem [shape: f32[48,29], index: 0, kind: input, shape index: {}]
  %s1 = inlined_call_operand.vmem [shape: bf16[29,128], index: 1, kind: input, shape index: {}]
  %s2 = inlined_call_operand.vmem [shape: f32[1,128], index: 2, kind: input, shape index: {}]
  %s3 = inlined_call_operand.vmem [shape: bf16[128,64], index: 3, kind: input, shape index: {}]
  %s4 = inlined_call_operand.vmem [shape: f32[1,64], index: 4, kind: input, shape index: {}]
  %s5 = inlined_call_operand.vmem [shape: bf16[64,8], index: 5, kind: input, shape index: {}]
  %s6 = inlined_call_operand.vmem [shape: f32[1,8], index: 6, kind: input, shape index: {}]
  %s7 = inlined_call_operand.vmem [shape: f32[48,8], index: 7, kind: output, shape index: {}]
  %s8 = sld [smem:[#allocation0]]
  $region61: #{tpu_custom_call.1} parent=0
    _
  %s10 = ssub.s32 1, %s8
  %s11 = scalar_select 0, %s10, %s8
  loop: start=0, step=1, limit=5
  $region2: #{tpu_custom_call.1} parent=0 // loop_pre_header
    _
  $region3: #{tpu_custom_call.1} parent=0 // loop_header
    %s13 = sphi 0, %s17
    %p14 = scmp.ge.s32.totalorder %s13, 5
    %s23 = sphi 0, %s25
    %s26 = sphi 0, %s23
    %s27 = sphi 0, %s26
    %s43 = sphi 0, %s27
    %s47 = sphi 0, %s47
    %s49 = sphi 0, %s47
    %s50 = sphi 0, %s49
    %s64 = sphi 0, %s50
    %s68 = sphi 0, %s68
    %s70 = sphi 0, %s68
    %s71 = sphi 0, %s70
    %s85 = sphi 0, %s71
    %s89 = sphi 0, %s89
    %s91 = sphi 0, %s89
    %s92 = sphi 0, %s91
    %s106 = sphi 0, %s92
    %s110 = sphi 0, %s110
    %s112 = sphi 0, %s110
    %s113 = sphi 0, %s112
    %s127 = sphi 0, %s113
    %s131 = sphi 0, %s131
    %s133 = sphi 0, %s131
    %s134 = sphi 0, %s133
    %s148 = sphi 0, %s134
    %s152 = sphi 0, %s152
    %s154 = sphi 0, %s152
    %s155 = sphi 0, %s154
    %s169 = sphi 0, %s155
    %s175 = sphi 0, %s177
    %s178 = sphi 0, %s175
    %s179 = sphi 0, %s178
    %s195 = sphi 0, %s179
  $region4: #{tpu_custom_call.1} parent=0 // loop_header_branch
    %16 = sbr.rel (%p14) target = $region8
  $region5: #{tpu_custom_call.1} parent=0 // loop_body
    %s18 = ssub.s32 %s13, 1
    %s19 = ssub.s32 %s13, 2
    %s20 = sadd.s32 %s13, 1
    %s21 = ssub.s32 %s13, %s20
    %p22 = scmp.eq.s32.totalorder %s21, 0
    %s24 = sadd.s32 %s23, 1
    %s25 = scalar_select %p22, %s23, %s24
    %p28 = pneg %p22
    %p29 = scmp.eq.s32.totalorder %s13, 2
    %p30 = por %p28, %p29
    %p31 = scmp.ne.s32.totalorder %s23, %s26
    %p32 = scmp.eq.s32.totalorder %s13, 0
    %p33 = por %p31, %p32
    %p34 = scmp.ne.s32.totalorder %s23, %s26
    %p35 = scmp.eq.s32.totalorder %s18, 2
    %p36 = por %p34, %p35
    %p37 = scmp.ne.s32.totalorder %s26, %s27
    %p38 = scmp.eq.s32.totalorder %s18, 0
    %p39 = por %p37, %p38
    %p40 = scmp.ne.s32.totalorder %s26, %s27
    %p41 = scmp.eq.s32.totalorder %s19, 2
    %p42 = por %p40, %p41
    %p44 = scmp.ne.s32.totalorder %s27, %s43
    %p45 = scmp.eq.s32.totalorder %s19, 0
    %p46 = por %p44, %p45
    %s48 = sadd.s32 %s47, 1
    %p51 = scmp.eq.s32.totalorder %s13, 2
    %p52 = scmp.ne.s32.totalorder %s47, %s49
    %p53 = scmp.eq.s32.totalorder %s13, 0
    %p54 = por %p52, %p53
    %p55 = scmp.ne.s32.totalorder %s47, %s49
    %p56 = scmp.eq.s32.totalorder %s18, 2
    %p57 = por %p55, %p56
    %p58 = scmp.ne.s32.totalorder %s49, %s50
    %p59 = scmp.eq.s32.totalorder %s18, 0
    %p60 = por %p58, %p59
    %p61 = scmp.ne.s32.totalorder %s49, %s50
    %p62 = scmp.eq.s32.totalorder %s19, 2
    %p63 = por %p61, %p62
    %p65 = scmp.ne.s32.totalorder %s50, %s64
    %p66 = scmp.eq.s32.totalorder %s19, 0
    %p67 = por %p65, %p66
    %s69 = sadd.s32 %s68, 1
    %p72 = scmp.eq.s32.totalorder %s13, 2
    %p73 = scmp.ne.s32.totalorder %s68, %s70
    %p74 = scmp.eq.s32.totalorder %s13, 0
    %p75 = por %p73, %p74
    %p76 = scmp.ne.s32.totalorder %s68, %s70
    %p77 = scmp.eq.s32.totalorder %s18, 2
    %p78 = por %p76, %p77
    %p79 = scmp.ne.s32.totalorder %s70, %s71
    %p80 = scmp.eq.s32.totalorder %s18, 0
    %p81 = por %p79, %p80
    %p82 = scmp.ne.s32.totalorder %s70, %s71
    %p83 = scmp.eq.s32.totalorder %s19, 2
    %p84 = por %p82, %p83
    %p86 = scmp.ne.s32.totalorder %s71, %s85
    %p87 = scmp.eq.s32.totalorder %s19, 0
    %p88 = por %p86, %p87
    %s90 = sadd.s32 %s89, 1
    %p93 = scmp.eq.s32.totalorder %s13, 2
    %p94 = scmp.ne.s32.totalorder %s89, %s91
    %p95 = scmp.eq.s32.totalorder %s13, 0
    %p96 = por %p94, %p95
    %p97 = scmp.ne.s32.totalorder %s89, %s91
    %p98 = scmp.eq.s32.totalorder %s18, 2
    %p99 = por %p97, %p98
    %p100 = scmp.ne.s32.totalorder %s91, %s92
    %p101 = scmp.eq.s32.totalorder %s18, 0
    %p102 = por %p100, %p101
    %p103 = scmp.ne.s32.totalorder %s91, %s92
    %p104 = scmp.eq.s32.totalorder %s19, 2
    %p105 = por %p103, %p104
    %p107 = scmp.ne.s32.totalorder %s92, %s106
    %p108 = scmp.eq.s32.totalorder %s19, 0
    %p109 = por %p107, %p108
    %s111 = sadd.s32 %s110, 1
    %p114 = scmp.eq.s32.totalorder %s13, 2
    %p115 = scmp.ne.s32.totalorder %s110, %s112
    %p116 = scmp.eq.s32.totalorder %s13, 0
    %p117 = por %p115, %p116
    %p118 = scmp.ne.s32.totalorder %s110, %s112
    %p119 = scmp.eq.s32.totalorder %s18, 2
    %p120 = por %p118, %p119
    %p121 = scmp.ne.s32.totalorder %s112, %s113
    %p122 = scmp.eq.s32.totalorder %s18, 0
    %p123 = por %p121, %p122
    %p124 = scmp.ne.s32.totalorder %s112, %s113
    %p125 = scmp.eq.s32.totalorder %s19, 2
    %p126 = por %p124, %p125
    %p128 = scmp.ne.s32.totalorder %s113, %s127
    %p129 = scmp.eq.s32.totalorder %s19, 0
    %p130 = por %p128, %p129
    %s132 = sadd.s32 %s131, 1
    %p135 = scmp.eq.s32.totalorder %s13, 2
    %p136 = scmp.ne.s32.totalorder %s131, %s133
    %p137 = scmp.eq.s32.totalorder %s13, 0
    %p138 = por %p136, %p137
    %p139 = scmp.ne.s32.totalorder %s131, %s133
    %p140 = scmp.eq.s32.totalorder %s18, 2
    %p141 = por %p139, %p140
    %p142 = scmp.ne.s32.totalorder %s133, %s134
    %p143 = scmp.eq.s32.totalorder %s18, 0
    %p144 = por %p142, %p143
    %p145 = scmp.ne.s32.totalorder %s133, %s134
    %p146 = scmp.eq.s32.totalorder %s19, 2
    %p147 = por %p145, %p146
    %p149 = scmp.ne.s32.totalorder %s134, %s148
    %p150 = scmp.eq.s32.totalorder %s19, 0
    %p151 = por %p149, %p150
    %s153 = sadd.s32 %s152, 1
    %p156 = scmp.eq.s32.totalorder %s13, 2
    %p157 = scmp.ne.s32.totalorder %s152, %s154
    %p158 = scmp.eq.s32.totalorder %s13, 0
    %p159 = por %p157, %p158
    %p160 = scmp.ne.s32.totalorder %s152, %s154
    %p161 = scmp.eq.s32.totalorder %s18, 2
    %p162 = por %p160, %p161
    %p163 = scmp.ne.s32.totalorder %s154, %s155
    %p164 = scmp.eq.s32.totalorder %s18, 0
    %p165 = por %p163, %p164
    %p166 = scmp.ne.s32.totalorder %s154, %s155
    %p167 = scmp.eq.s32.totalorder %s19, 2
    %p168 = por %p166, %p167
    %p170 = scmp.ne.s32.totalorder %s155, %s169
    %p171 = scmp.eq.s32.totalorder %s19, 0
    %p172 = por %p170, %p171
    %s173 = ssub.s32 %s13, %s20
    %p174 = scmp.eq.s32.totalorder %s173, 0
    %s176 = sadd.s32 %s175, 1
    %s177 = scalar_select %p174, %s175, %s176
    %p180 = pneg %p174
    %p181 = scmp.eq.s32.totalorder %s13, 2
    %p182 = por %p180, %p181
    %p183 = scmp.ne.s32.totalorder %s175, %s178
    %p184 = scmp.eq.s32.totalorder %s13, 0
    %p185 = por %p183, %p184
    %p186 = scmp.ne.s32.totalorder %s175, %s178
    %p187 = scmp.eq.s32.totalorder %s18, 2
    %p188 = por %p186, %p187
    %p189 = scmp.ne.s32.totalorder %s178, %s179
    %p190 = scmp.eq.s32.totalorder %s18, 0
    %p191 = por %p189, %p190
    %p192 = scmp.ne.s32.totalorder %s178, %s179
    %p193 = scmp.eq.s32.totalorder %s19, 2
    %p194 = por %p192, %p193
    %p196 = scmp.ne.s32.totalorder %s179, %s195
    %p197 = scmp.eq.s32.totalorder %s19, 0
    %p198 = por %p196, %p197
    %p199 = scmp.le.s32.totalorder 1, %s13
    %p200 = scmp.lt.s32.totalorder %s13, 4
    %p201 = pnand %p199, %p200
    %p202 = pneg %p201
    // Predicated region
    $region9: #{tpu_custom_call.1} parent=5 // pred_check
      _
    $region10: #{tpu_custom_call.1} parent=5 // pred_check_branch
      %204 = sbr.rel (%p201) target = $region12
    $region11: #{tpu_custom_call.1} parent=5 // pred_region
      %s205 = ssub.s32 %s13, 1
      // Predicated region
      $region13: #{tpu_custom_call.1} parent=11 // pred_check
        %p206 = pneg %p60
      $region14: #{tpu_custom_call.1} parent=11 // pred_check_branch
        %208 = sbr.rel (%p206) target = $region16
      $region15: #{tpu_custom_call.1} parent=11 // pred_region
        _
      $region16: #{tpu_custom_call.1} parent=11 // pred_fallthru
        _
      // Predicated region
      $region17: #{tpu_custom_call.1} parent=11 // pred_check
        %p209 = pneg %p81
      $region18: #{tpu_custom_call.1} parent=11 // pred_check_branch
        %211 = sbr.rel (%p209) target = $region20
      $region19: #{tpu_custom_call.1} parent=11 // pred_region
        _
      $region20: #{tpu_custom_call.1} parent=11 // pred_fallthru
        _
      // Predicated region
      $region21: #{tpu_custom_call.1} parent=11 // pred_check
        %p212 = pneg %p102
      $region22: #{tpu_custom_call.1} parent=11 // pred_check_branch
        %214 = sbr.rel (%p212) target = $region24
      $region23: #{tpu_custom_call.1} parent=11 // pred_region
        _
      $region24: #{tpu_custom_call.1} parent=11 // pred_fallthru
        _
      // Predicated region
      $region25: #{tpu_custom_call.1} parent=11 // pred_check
        %p215 = pneg %p123
      $region26: #{tpu_custom_call.1} parent=11 // pred_check_branch
        %217 = sbr.rel (%p215) target = $region28
      $region27: #{tpu_custom_call.1} parent=11 // pred_region
        _
      $region28: #{tpu_custom_call.1} parent=11 // pred_fallthru
        _
      // Predicated region
      $region29: #{tpu_custom_call.1} parent=11 // pred_check
        %p218 = pneg %p144
      $region30: #{tpu_custom_call.1} parent=11 // pred_check_branch
        %220 = sbr.rel (%p218) target = $region32
      $region31: #{tpu_custom_call.1} parent=11 // pred_region
        _
      $region32: #{tpu_custom_call.1} parent=11 // pred_fallthru
        _
      // Predicated region
      $region33: #{tpu_custom_call.1} parent=11 // pred_check
        %p221 = pneg %p165
      $region34: #{tpu_custom_call.1} parent=11 // pred_check_branch
        %223 = sbr.rel (%p221) target = $region36
      $region35: #{tpu_custom_call.1} parent=11 // pred_region
        _
      $region36: #{tpu_custom_call.1} parent=11 // pred_fallthru
        _
    $region12: #{tpu_custom_call.1} parent=5 // pred_fallthru
      _
    %p224 = scmp.lt.s32.totalorder %s13, 3
    // Predicated region
    $region37: #{tpu_custom_call.1} parent=5 // pred_check
      %p225 = pneg %p224
    $region38: #{tpu_custom_call.1} parent=5 // pred_check_branch
      %227 = sbr.rel (%p225) target = $region40
    $region39: #{tpu_custom_call.1} parent=5 // pred_region
      // Predicated region
      $region41: #{tpu_custom_call.1} parent=39 // pred_check
        %p228 = pneg %p33
      $region42: #{tpu_custom_call.1} parent=39 // pred_check_branch
        %230 = sbr.rel (%p228) target = $region44
      $region43: #{tpu_custom_call.1} parent=39 // pred_region
        %s231 = smul.u32 2, %s13
        %p232 = scmp.lt.s32.totalorder %s231, 5
        %s233 = scalar_select %p232, %s231, 5
        %s234 = smul.addr %s233, 8
        %s235 = scalar_lea.vmem %s0, %s234
        %s236 = smul.u32 2, %s13
      $region44: #{tpu_custom_call.1} parent=39 // pred_fallthru
        _
    $region40: #{tpu_custom_call.1} parent=5 // pred_fallthru
      _
    %p237 = scmp.le.s32.totalorder 1, %s13
    %p238 = scmp.lt.s32.totalorder %s13, 4
    %p239 = pnand %p237, %p238
    %p240 = pneg %p239
    // Predicated region
    $region45: #{tpu_custom_call.1} parent=5 // pred_check
      _
    $region46: #{tpu_custom_call.1} parent=5 // pred_check_branch
      %242 = sbr.rel (%p239) target = $region48
    $region47: #{tpu_custom_call.1} parent=5 // pred_region
      %s243 = ssub.s32 %s13, 1
      %s244 = smul.u32 2, %s18
      %p245 = scmp.lt.s32.totalorder %s244, 5
      %s246 = scalar_select %p245, %s244, 5
      %s247 = smul.addr %s246, 8
      %s248 = scalar_lea.vmem %s0, %s247
      %p249 = pneg %p39
      %p250 = pneg %p36
      %p251 = pneg %p60
      %p252 = pneg %p57
      %p253 = pneg %p81
      %p254 = pneg %p78
      %p255 = pneg %p102
      %p256 = pneg %p99
      %p257 = pneg %p123
      %p258 = pneg %p120
      %p259 = pneg %p144
      %p260 = pneg %p141
      %p261 = pneg %p165
      %p262 = pneg %p162
      %p263 = pneg %p191
      %p264 = pneg %p188
      %s265 = smul.u32 2, %s18
      %p266 = scmp.lt.s32.totalorder %s265, 5
      %s267 = scalar_select %p266, %s265, 5
      %s268 = smul.addr %s267, 8
      %s269 = scalar_lea.vmem %s7, %s268
      %s270 = smul.u32 2, %s18
      %p271 = scmp.lt.s32.totalorder %s270, 5
      %s272 = scalar_select %p271, %s270, 5
      %s273 = smul.addr %s272, 8
      %s274 = scalar_lea.vmem %s0, %s273
      %s275 = smul.u32 2, %s18
      %s276 = smul.u32 2, %s18
      %p277 = scmp.lt.s32.totalorder %s276, 5
      %s278 = scalar_select %p277, %s276, 5
      %s279 = smul.addr %s278, 8
      %s280 = scalar_lea.vmem %s7, %s279
      %s281 = smul.u32 2, %s18
      %v283 = vld [vmem:[%s274] sm:$0xff]
      %v284 = vld [vmem:[%s274 + $0x8] sm:$0xff]
      %v285 = vpack.c.bf16 %v284, %v283
      %v286 = vld [vmem:[%s1] sm:$0xf]
      %v287 = vld [vmem:[%s1 + $0x4] sm:$0xf]
      %v288 = vld [vmem:[%s1 + $0x8] sm:$0xf]
      %v289 = vld [vmem:[%s1 + $0xc] sm:$0x7]
      %v290 = vld [vmem:[%s2] sm:$0x1]
      %v292 = vperm.slane %v290, 0
      %v298 = vunpack.c.l.b16 %v286
      %v299 = vunpack.c.l.b16 %v287
      %v300 = vunpack.c.l.b16 %v288
      %v301 = vunpack.c.l.b16 %v289
      %v302 = vpack.c.b16 %v299, %v298
      %v303 = vpack.c.b16 %v301, %v300
      %vm305 = vcmask 236544
      %v307 = vsel %vm305, %v285, 0
      %vm309 = vcmask 1045504
      %vm310 = vcmask 1046528
      %v311 = vsel %vm309, 4294967295, 65535
      %v312 = vsel %vm310, %v311, 0
      %v314 = vand.u32 %v303, %v312
      %316 = vmatpush.bf16.msra.mxu0 0
      %317 = vmatpush.bf16.msra.mxu0 0
      %318 = vmatpush.bf16.msra.mxu0 0
      %319 = vmatpush.bf16.msra.mxu0 0
      %320 = vmatpush.bf16.msra.mxu0 0
      %321 = vmatpush.bf16.msra.mxu0 0
      %322 = vmatpush.bf16.msra.mxu0 %v314
      %323 = vmatpush.bf16.msra.mxu0 %v302
      %324 = vmatmul.bf16.gmra.mxu0 %v307
      %v325 = vpop.f32.mrf.mxu0
      %v326 = vadd.f32 %v292, %v325
      %v327 = vpop.f32.mrf.mxu0
      %v328 = vadd.f32 %v292, %v327
      %329 = vdwg.mxu0
      %v330 = vmax.f32 %v326, 0.0
      %v331 = vmax.f32 %v328, 0.0
      %v332 = vpack.c.bf16 %v331, %v330
      %v333 = vld [vmem:[%s3] sm:$0xf]
      %v334 = vld [vmem:[%s3 + $0x4] sm:$0xf]
      %v335 = vld [vmem:[%s3 + $0x8] sm:$0xf]
      %v336 = vld [vmem:[%s3 + $0xc] sm:$0xf]
      %v337 = vld [vmem:[%s3 + $0x10] sm:$0xf]
      %v338 = vld [vmem:[%s3 + $0x14] sm:$0xf]
      %v339 = vld [vmem:[%s3 + $0x18] sm:$0xf]
      %v340 = vld [vmem:[%s3 + $0x1c] sm:$0xf]
      %v341 = vld [vmem:[%s3 + $0x20] sm:$0xf]
      %v342 = vld [vmem:[%s3 + $0x24] sm:$0xf]
      %v343 = vld [vmem:[%s3 + $0x28] sm:$0xf]
      %v344 = vld [vmem:[%s3 + $0x2c] sm:$0xf]
      %v345 = vld [vmem:[%s3 + $0x30] sm:$0xf]
      %v346 = vld [vmem:[%s3 + $0x34] sm:$0xf]
      %v347 = vld [vmem:[%s3 + $0x38] sm:$0xf]
      %v348 = vld [vmem:[%s3 + $0x3c] sm:$0xf]
      %v349 = vld [vmem:[%s4] sm:$0x1]
      %v351 = vperm.slane %v349, 0
      %v369 = vunpack.c.l.b16 %v333
      %v370 = vunpack.c.l.b16 %v334
      %v371 = vunpack.c.l.b16 %v335
      %v372 = vunpack.c.l.b16 %v336
      %v373 = vunpack.c.l.b16 %v337
      %v374 = vunpack.c.l.b16 %v338
      %v375 = vunpack.c.l.b16 %v339
      %v376 = vunpack.c.l.b16 %v340
      %v377 = vunpack.c.l.b16 %v341
      %v378 = vunpack.c.l.b16 %v342
      %v379 = vunpack.c.l.b16 %v343
      %v380 = vunpack.c.l.b16 %v344
      %v381 = vunpack.c.l.b16 %v345
      %v382 = vunpack.c.l.b16 %v346
      %v383 = vunpack.c.l.b16 %v347
      %v384 = vunpack.c.l.b16 %v348
      %v385 = vpack.c.b16 %v370, %v369
      %v386 = vpack.c.b16 %v372, %v371
      %v387 = vpack.c.b16 %v374, %v373
      %v388 = vpack.c.b16 %v376, %v375
      %v389 = vpack.c.b16 %v378, %v377
      %v390 = vpack.c.b16 %v380, %v379
      %v391 = vpack.c.b16 %v382, %v381
      %v392 = vpack.c.b16 %v384, %v383
      %401 = vmatpush.bf16.msra.mxu0 %v392
      %402 = vmatpush.bf16.msra.mxu0 %v391
      %403 = vmatpush.bf16.msra.mxu0 %v390
      %404 = vmatpush.bf16.msra.mxu0 %v389
      %405 = vmatpush.bf16.msra.mxu0 %v388
      %406 = vmatpush.bf16.msra.mxu0 %v387
      %407 = vmatpush.bf16.msra.mxu0 %v386
      %408 = vmatpush.bf16.msra.mxu0 %v385
      %409 = vmatmul.bf16.gmra.mxu0 %v332
      %v410 = vpop.f32.mrf.mxu0
      %v411 = vadd.f32 %v351, %v410
      %v412 = vpop.f32.mrf.mxu0
      %v413 = vadd.f32 %v351, %v412
      %414 = vdwg.mxu0
      %v415 = vmax.f32 %v411, 0.0
      %v416 = vmax.f32 %v413, 0.0
      %v417 = vpack.c.bf16 %v416, %v415
      %v418 = vld [vmem:[%s5] sm:$0xf]
      %v419 = vld [vmem:[%s5 + $0x4] sm:$0xf]
      %v420 = vld [vmem:[%s5 + $0x8] sm:$0xf]
      %v421 = vld [vmem:[%s5 + $0xc] sm:$0xf]
      %v422 = vld [vmem:[%s5 + $0x10] sm:$0xf]
      %v423 = vld [vmem:[%s5 + $0x14] sm:$0xf]
      %v424 = vld [vmem:[%s5 + $0x18] sm:$0xf]
      %v425 = vld [vmem:[%s5 + $0x1c] sm:$0xf]
      %v426 = vld [vmem:[%s6] sm:$0x1]
      %v428 = vperm.slane %v426, 0
      %v438 = vunpack.c.l.b16 %v418
      %v439 = vunpack.c.l.b16 %v419
      %v440 = vunpack.c.l.b16 %v420
      %v441 = vunpack.c.l.b16 %v421
      %v442 = vunpack.c.l.b16 %v422
      %v443 = vunpack.c.l.b16 %v423
      %v444 = vunpack.c.l.b16 %v424
      %v445 = vunpack.c.l.b16 %v425
      %v446 = vpack.c.b16 %v439, %v438
      %v447 = vpack.c.b16 %v441, %v440
      %v448 = vpack.c.b16 %v443, %v442
      %v449 = vpack.c.b16 %v445, %v444
      %vm454 = vcmask 523264
      %v456 = vsel %vm454, %v417, 0
      %458 = vmatpush.bf16.msra.mxu0 0
      %459 = vmatpush.bf16.msra.mxu0 0
      %460 = vmatpush.bf16.msra.mxu0 0
      %461 = vmatpush.bf16.msra.mxu0 0
      %462 = vmatpush.bf16.msra.mxu0 %v449
      %463 = vmatpush.bf16.msra.mxu0 %v448
      %464 = vmatpush.bf16.msra.mxu0 %v447
      %465 = vmatpush.bf16.msra.mxu0 %v446
      %466 = vmatmul.bf16.gmra.mxu0 %v456
      %v467 = vpop.f32.mrf.mxu0
      %v468 = vadd.f32 %v428, %v467
      %v469 = vpop.f32.mrf.mxu0
      %v470 = vadd.f32 %v428, %v469
      %471 = vdwg.mxu0
      %vm472 = vcmask 64512
      %473 = vst.msk [vmem:[%s280] sm:$0xff] %vm472, %v468
      %474 = vst.msk [vmem:[%s280 + $0x8] sm:$0xff] %vm472, %v470
      %s475 = smul.u32 2, %s18
      %p476 = scmp.lt.s32.totalorder %s475, 5
      %s477 = scalar_select %p476, %s475, 5
      %s478 = smul.addr %s477, 8
      %s479 = scalar_lea.vmem %s7, %s478
      // Predicated region
      $region49: #{tpu_custom_call.1} parent=47 // pred_check
        %p480 = pneg %p188
      $region50: #{tpu_custom_call.1} parent=47 // pred_check_branch
        %482 = sbr.rel (%p480) target = $region52
      $region51: #{tpu_custom_call.1} parent=47 // pred_region
        %s483 = smul.u32 2, %s18
      $region52: #{tpu_custom_call.1} parent=47 // pred_fallthru
        _
    $region48: #{tpu_custom_call.1} parent=5 // pred_fallthru
      _
    %p484 = scmp.le.s32.totalorder 2, %s13
    // Predicated region
    $region53: #{tpu_custom_call.1} parent=5 // pred_check
      %p485 = pneg %p484
    $region54: #{tpu_custom_call.1} parent=5 // pred_check_branch
      %487 = sbr.rel (%p485) target = $region56
    $region55: #{tpu_custom_call.1} parent=5 // pred_region
      %s488 = ssub.s32 %s13, 2
      // Predicated region
      $region57: #{tpu_custom_call.1} parent=55 // pred_check
        %p489 = pneg %p194
      $region58: #{tpu_custom_call.1} parent=55 // pred_check_branch
        %491 = sbr.rel (%p489) target = $region60
      $region59: #{tpu_custom_call.1} parent=55 // pred_region
        %s492 = smul.u32 2, %s19
        %p493 = scmp.lt.s32.totalorder %s492, 5
        %s494 = scalar_select %p493, %s492, 5
        %s495 = smul.addr %s494, 8
        %s496 = scalar_lea.vmem %s7, %s495
      $region60: #{tpu_custom_call.1} parent=55 // pred_fallthru
        _
    $region56: #{tpu_custom_call.1} parent=5 // pred_fallthru
      _
  $region6: #{tpu_custom_call.1} parent=0 // loop_footer
    %s17 = sadd.s32 1, %s13
  $region7: #{tpu_custom_call.1} parent=0 // loop_footer_branch
    %12 = sbr.rel target = $region3
  $region8: #{tpu_custom_call.1} parent=0 // loop_exit
    _

</llo_original>
